<compile_context>
chip_gen: v5e
topology: v5e:2x2
jax: 0.10.0
libtpu: 0.0.40
codegen_flags: <defaults>
</compile_context>

<pallas_src>
import functools
import math

import jax
import jax.numpy as jnp
from jax.experimental import pallas as pl
from jax.experimental.pallas import tpu as pltpu


def _rmlm_kernel(lhs_ref, r_ref, o_ref, *, split):
    # lhs = [[f, 0], [0, g]]  (2*Bp, F+C),  r tile = [[s*Rf], [Rg]]  (F+C, tn).
    # One fused MXU matmul; rows [:split] hold f @ (s*Rf), rows [split:] hold g @ Rg.
    prod = jnp.dot(lhs_ref[...], r_ref[...], preferred_element_type=jnp.float32)
    o_ref[...] = (prod[:split, :] * prod[split:, :]).astype(o_ref.dtype)


def _choose_tile_n(output_dim, col_bytes):
    """Pick the output-column tile width.

    col_bytes: streamed bytes per output column (R tile column + out column).
    """
    # Small problems: keep the whole output / projection resident -> 1-step grid,
    # no per-step pipeline overhead, fully lane-dense stores.
    if output_dim * col_bytes <= (4 << 20):
        return output_dim
    # Otherwise: largest tile in {256,512,1024,2048} that divides D, keeps >= 4
    # grid steps (so both v7x TensorCores get pipelined work), and whose
    # double-buffered streamed bytes stay well under the 16 MiB v5e scoped VMEM.
    budget = 10 << 20
    best = 128
    for tn in (256, 512, 1024, 2048):
        if (tn <= output_dim and output_dim % tn == 0
                and output_dim // tn >= 4 and 2 * tn * col_bytes <= budget):
            best = tn
    return best


def _rmlm_pallas(lhs, R, *, b_pad, out_dtype, tile_n=None):
    two_b, fc = lhs.shape
    fc_r, D = R.shape
    assert fc == fc_r and two_b == 2 * b_pad

    out_itemsize = jnp.dtype(out_dtype).itemsize
    col_bytes = fc * R.dtype.itemsize + b_pad * out_itemsize
    tn = tile_n if tile_n is not None else _choose_tile_n(D, col_bytes)
    grid = (pl.cdiv(D, tn),)

    # Advisory cost hint for XLA's scheduler around the custom call.
    flops = 2 * two_b * fc * D + b_pad * D
    bytes_accessed = (fc * D * R.dtype.itemsize
                      + two_b * fc * lhs.dtype.itemsize
                      + b_pad * D * out_itemsize)

    kernel = functools.partial(_rmlm_kernel, split=b_pad)
    return pl.pallas_call(
        kernel,
        out_shape=jax.ShapeDtypeStruct((b_pad, D), out_dtype),
        grid_spec=pltpu.PrefetchScalarGridSpec(
            num_scalar_prefetch=0,
            grid=grid,
            in_specs=[
                # Block-diagonal LHS is tiny: keep it resident across all tiles.
                pl.BlockSpec((two_b, fc), lambda j: (0, 0)),
                # Fused projection matrix streamed along output columns.
                pl.BlockSpec((fc, tn), lambda j: (0, j)),
            ],
            out_specs=pl.BlockSpec((b_pad, tn), lambda j: (0, j)),
        ),
        compiler_params=pltpu.CompilerParams(
            dimension_semantics=("parallel",)),
        cost_estimate=pl.CostEstimate(
            flops=flops, transcendentals=0, bytes_accessed=bytes_accessed),
    )(lhs, R)


class RandomizedMultiLinearMap:
    """JAX/Pallas equivalent of the PyTorch RandomizedMultiLinearMap module."""

    def __init__(self, features_dim, num_classes, output_dim=1024, *,
                 key=None, param_dtype=jnp.bfloat16):
        if key is None:
            key = jax.random.PRNGKey(0)
        kf, kg = jax.random.split(key)
        self.features_dim = int(features_dim)
        self.num_classes = int(num_classes)
        self.output_dim = int(output_dim)
        # Random projections sampled once and fixed (torch.randn equivalent).
        self.Rf = jax.random.normal(kf, (features_dim, output_dim), jnp.float32)
        self.Rg = jax.random.normal(kg, (num_classes, output_dim), jnp.float32)
        # Construction-time preprocessing (all one-time, outside the hot path):
        #   * fold 1/sqrt(D) into Rf (exact identity)
        #   * concatenate into one (F+C, D) matrix for a single fused matmul
        #   * cast to param_dtype (bf16 halves the dominant HBM traffic)
        scale = 1.0 / math.sqrt(float(output_dim))
        self.param_dtype = jnp.dtype(param_dtype)
        self.R = jnp.concatenate(
            [self.Rf * scale, self.Rg], axis=0).astype(self.param_dtype)

    def __call__(self, f, g, *, tile_n=None):
        B, F = f.shape
        Bg, C = g.shape
        assert Bg == B and F == self.features_dim and C == self.num_classes
        # Round the batch up to a sublane multiple so the in-kernel row split
        # of the fused product stays (8, 128)-aligned.
        b_pad = -(-B // 8) * 8
        # Block-diagonal LHS [[f, 0], [0, g]]  -> a single fused contraction.
        lhs = jnp.zeros((2 * b_pad, F + C), self.param_dtype)
        lhs = lhs.at[:B, :F].set(f.astype(self.param_dtype))
        lhs = lhs.at[b_pad:b_pad + B, F:].set(g.astype(self.param_dtype))
        out = _rmlm_pallas(lhs, self.R, b_pad=b_pad, out_dtype=f.dtype,
                           tile_n=tile_n)
        return out if b_pad == B else out[:B]


def reference(f, g, Rf, Rg):
    output_dim = Rf.shape[1]
    return (f @ Rf) * (g @ Rg) / jnp.sqrt(jnp.float32(output_dim))


if __name__ == "__main__":
    key = jax.random.PRNGKey(0)
    k_f, k_g, k_m1, k_m2 = jax.random.split(key, 4)

    batch = 8
    features_dim = 32
    num_classes = 8
    output_dim = 256

    f = jax.random.normal(k_f, (batch, features_dim), dtype=jnp.float32)
    g = jax.random.normal(k_g, (batch, num_classes), dtype=jnp.float32)

    # --- exact f32 path (matches the PyTorch module's math) -----------------
    m32 = RandomizedMultiLinearMap(features_dim, num_classes, output_dim,
                                   key=k_m1, param_dtype=jnp.float32)
    out32 = jax.block_until_ready(m32(f, g))
    ref32 = reference(f, g, m32.Rf, m32.Rg)
    assert out32.shape == (batch, output_dim)
    assert jnp.allclose(out32, ref32, atol=1e-3, rtol=1e-4), "f32 mismatch"

    # --- bf16 projections (default; halves HBM traffic, f32 accumulation) ---
    m16 = RandomizedMultiLinearMap(features_dim, num_classes, output_dim,
                                   key=k_m1, param_dtype=jnp.bfloat16)
    out16 = jax.block_until_ready(m16(f, g))
    assert out16.shape == (batch, output_dim)
    assert jnp.allclose(out16, ref32, atol=5e-2, rtol=5e-2), "bf16 mismatch"

    # --- tiled-grid path (force a 128-wide column tile over D=512) ----------
    m_big = RandomizedMultiLinearMap(features_dim, num_classes, 512,
                                     key=k_m2, param_dtype=jnp.float32)
    out_big = jax.block_until_ready(m_big(f, g, tile_n=128))
    ref_big = reference(f, g, m_big.Rf, m_big.Rg)
    assert out_big.shape == (batch, 512)
    assert jnp.allclose(out_big, ref_big, atol=1e-3, rtol=1e-4), "tiled mismatch"

    print("KERNEL_OK")
</pallas_src>

<mosaic_0001>
module attributes {stable_mosaic.version = 11 : i64} {
  func.func @_rmlm_kernel(%arg0: i32, %arg1: memref<16x40xf32, #tpu.memory_space<vmem>>, %arg2: memref<40x256xf32, #tpu.memory_space<vmem>>, %arg3: memref<8x256xf32, #tpu.memory_space<vmem>>) attributes {dimension_semantics = [#tpu.dimension_semantics<parallel>], iteration_bounds = array<i64: 1>, scalar_prefetch = 0 : i64, scratch_operands = 0 : i64, tpu.core_type = #tpu.core_type<tc>, window_params = [{pipeline_mode = #tpu.pipeline_mode<synchronous>, transform_indices = @transform_0, window_bounds = array<i64: 16, 40>}, {transform_indices = @transform_1, window_bounds = array<i64: 40, 256>}, {transform_indices = @transform_2, window_bounds = array<i64: 8, 256>}]} {
    %c0 = arith.constant 0 : index
    %c0_0 = arith.constant 0 : index
    %0 = vector.load %arg1[%c0, %c0_0] : memref<16x40xf32, #tpu.memory_space<vmem>>, vector<16x40xf32>
    %c0_1 = arith.constant 0 : index
    %c0_2 = arith.constant 0 : index
    %1 = vector.load %arg2[%c0_1, %c0_2] : memref<40x256xf32, #tpu.memory_space<vmem>>, vector<40x256xf32>
    %cst = arith.constant dense<0.000000e+00> : vector<16x256xf32>
    %2 = tpu.matmul %0, %1, %cst {dimension_numbers = #tpu.dot_dimension_numbers<[1], [0], [0], [1], [0, 0, 1, 1], [], []>} : vector<16x40xf32>, vector<40x256xf32>, vector<16x256xf32> -> vector<16x256xf32>
    %3 = vector.extract_strided_slice %2 {offsets = [0, 0], sizes = [8, 256], strides = [1, 1]} : vector<16x256xf32> to vector<8x256xf32>
    %4 = vector.extract_strided_slice %2 {offsets = [8, 0], sizes = [8, 256], strides = [1, 1]} : vector<16x256xf32> to vector<8x256xf32>
    %5 = arith.mulf %3, %4 : vector<8x256xf32>
    %c0_3 = arith.constant 0 : index
    %c0_4 = arith.constant 0 : index
    %6 = vector.load %arg3[%c0_3, %c0_4] : memref<8x256xf32, #tpu.memory_space<vmem>>, vector<8x256xf32>
    tpu.vector_store %arg3[%c0_3, %c0_4], %5 {strides = array<i32>} : memref<8x256xf32, #tpu.memory_space<vmem>>, vector<8x256xf32>,
    return
  }
  func.func @transform_0(%arg0: i32) -> (i32, i32) {
    %c0_i32 = arith.constant 0 : i32
    %c0_i32_0 = arith.constant 0 : i32
    %c0_i32_1 = arith.constant 0 : i32
    return %c0_i32, %c0_i32_0 : i32, i32
  }
  func.func @transform_1(%arg0: i32) -> (i32, i32) {
    %c0_i32 = arith.constant 0 : i32
    %c0_i32_0 = arith.constant 0 : i32
    return %c0_i32, %arg0 : i32, i32
  }
  func.func @transform_2(%arg0: i32) -> (i32, i32) {
    %c0_i32 = arith.constant 0 : i32
    %c0_i32_0 = arith.constant 0 : i32
    return %c0_i32, %arg0 : i32, i32
  }
}

</mosaic_0001>

<llo_original>
// kernel: tpu_custom_call.1
$region0: #{tpu_custom_call.1}
  #allocation0 [shape = 'u32[]', space=smem, size = 0x4, offset = 0x4, fixed_abs, tag = 'smem constant byte address 0x4 - core index']
  #allocation1 [shape = 'u32[72,128]{1,0:T(1,128)}', space=vmem, size = 0x9000, scoped, tag = 'internal scratch']
  %s0 = inlined_call_operand.hbm [shape: f32[16,40], index: 0, kind: input, shape index: {}]
  %s1 = inlined_call_operand.hbm [shape: f32[40,256], index: 1, kind: input, shape index: {}]
  %s2 = inlined_call_operand.hbm [shape: f32[8,256], index: 2, kind: output, shape index: {}]
  %s3 = sld [smem:[#allocation0]]
  $region26: #{tpu_custom_call.1} parent=0
    _
  %s5 = ssub.s32 1, %s3
  %s6 = scalar_select 0, %s5, %s3
  $region1: #{tpu_custom_call.1} parent=0
    #allocation2 [shape = 'u8[8192]{0}', space=vmem, size = 0x2000, scoped, tag = 'input window, operand 0, single buffered']
    #allocation3 [shape = 's32[1]{0}', space=sflag, size = 0x4, scoped, tag = 'scoped memory for tpu_custom_call.1']
    #allocation4 [shape = 's32[1]{0}', space=sflag, size = 0x4, scoped, tag = 'scoped memory for tpu_custom_call.1']
    #allocation5 [shape = 'u8[40960]{0}', space=vmem, size = 0xa000, scoped, tag = 'input window, operand 1, single buffered']
    #allocation6 [shape = 's32[1]{0}', space=sflag, size = 0x4, scoped, tag = 'scoped memory for tpu_custom_call.1']
    #allocation7 [shape = 'u8[8192]{0}', space=vmem, size = 0x2000, scoped, tag = 'output window, operand 0, single buffered']
    %7 = vsyncpa [#allocation3], 0
    %8 = vsyncpa [#allocation6], 0
    %9 = vsyncpa [#allocation4], 0
    // Predicated region
    $region2: #{tpu_custom_call.1} parent=1 // pred_check
      _
    $region3: #{tpu_custom_call.1} parent=1 // pred_check_branch
      %11 = sbr.rel (0) target = $region5
    $region4: #{tpu_custom_call.1} parent=1 // pred_region
      %13 = vsyncadd [#allocation3], 0
      %s14 = sshll.u32 %s0, 4
      %s15 = int_to_ptr.hbm [resolvable:$true] %s14
      %s16 = sshll.u32 [#allocation2], 4
      %s17 = int_to_ptr.vmem [resolvable:$true] %s16
      %22 = dma.hbm_to_vmem [thread:$0]  %s15, 256, %s17, [#allocation3], 128, 128, 8
    $region5: #{tpu_custom_call.1} parent=1 // pred_fallthru
      _
    // Predicated region
    $region6: #{tpu_custom_call.1} parent=1 // pred_check
      _
    $region7: #{tpu_custom_call.1} parent=1 // pred_check_branch
      %24 = sbr.rel (0) target = $region9
    $region8: #{tpu_custom_call.1} parent=1 // pred_region
      %26 = vsyncadd [#allocation6], 0
      %s27 = sshll.u32 %s1, 4
      %s28 = int_to_ptr.hbm [resolvable:$true] %s27
      %s29 = sshll.u32 [#allocation5], 4
      %s30 = int_to_ptr.vmem [resolvable:$true] %s29
      %35 = dma.hbm_to_vmem [thread:$0]  %s28, 1280, %s30, [#allocation6], 256, 256, 16
    $region9: #{tpu_custom_call.1} parent=1 // pred_fallthru
      _
    // Predicated region
    $region10: #{tpu_custom_call.1} parent=1 // pred_check
      _
    $region11: #{tpu_custom_call.1} parent=1 // pred_check_branch
      %37 = sbr.rel (0) target = $region13
    $region12: #{tpu_custom_call.1} parent=1 // pred_region
      %39 = dma.done [#allocation3], 256
    $region13: #{tpu_custom_call.1} parent=1 // pred_fallthru
      _
    // Predicated region
    $region14: #{tpu_custom_call.1} parent=1 // pred_check
      _
    $region15: #{tpu_custom_call.1} parent=1 // pred_check_branch
      %41 = sbr.rel (0) target = $region17
    $region16: #{tpu_custom_call.1} parent=1 // pred_region
      %43 = dma.done [#allocation6], 1280
    $region17: #{tpu_custom_call.1} parent=1 // pred_fallthru
      _
    %v44 = vld [vmem:[#allocation2] sm:$0xff]
    %v45 = vld [vmem:[#allocation2 + $0x8] sm:$0xff]
    %v46 = vld [vmem:[#allocation5] sm:$0xff]
    %v47 = vld [vmem:[#allocation5 + $0x8] sm:$0xff]
    %v48 = vld [vmem:[#allocation5 + $0x10] sm:$0xff]
    %v49 = vld [vmem:[#allocation5 + $0x18] sm:$0xff]
    %v50 = vld [vmem:[#allocation5 + $0x20] sm:$0xff]
    %v51 = vld [vmem:[#allocation5 + $0x28] sm:$0xff]
    %v52 = vld [vmem:[#allocation5 + $0x30] sm:$0xff]
    %v53 = vld [vmem:[#allocation5 + $0x38] sm:$0xff]
    %v54 = vld [vmem:[#allocation5 + $0x40] sm:$0xff]
    %v55 = vld [vmem:[#allocation5 + $0x48] sm:$0xff]
    %vm56 = vcmask 326656
    %v58 = vsel %vm56, %v44, 0
    %v61 = vsel %vm56, %v45, 0
    %63 = vmatpush.msra.mxu0 0.0
    %64 = vmatpush.msra.mxu0 0.0
    %65 = vmatpush.msra.mxu0 0.0
    %66 = vmatpush.msra.mxu0 0.0
    %67 = vmatpush.msra.mxu0 0.0
    %68 = vmatpush.msra.mxu0 0.0
    %69 = vmatpush.msra.mxu0 0.0
    %70 = vmatpush.msra.mxu0 0.0
    %71 = vmatpush.msra.mxu0 0.0
    %72 = vmatpush.msra.mxu0 0.0
    %73 = vmatpush.msra.mxu0 0.0
    %74 = vmatpush.msra.mxu0 %v54
    %75 = vmatpush.msra.mxu0 %v52
    %76 = vmatpush.msra.mxu0 %v50
    %77 = vmatpush.msra.mxu0 %v48
    %78 = vmatpush.msra.mxu0 %v46
    %79 = vmatmul.f32.gmra.mxu0 %v58
    %v80 = vpop.f32.mrf.mxu0
    %v81 = vadd.f32 0.0, %v80
    %82 = vmatmul.f32.gmra.mxu0 %v61
    %v83 = vpop.f32.mrf.mxu0
    %v84 = vadd.f32 0.0, %v83
    %85 = vdwg.mxu0
    %86 = vmatpush.msra.mxu0 0.0
    %87 = vmatpush.msra.mxu0 0.0
    %88 = vmatpush.msra.mxu0 0.0
    %89 = vmatpush.msra.mxu0 0.0
    %90 = vmatpush.msra.mxu0 0.0
    %91 = vmatpush.msra.mxu0 0.0
    %92 = vmatpush.msra.mxu0 0.0
    %93 = vmatpush.msra.mxu0 0.0
    %94 = vmatpush.msra.mxu0 0.0
    %95 = vmatpush.msra.mxu0 0.0
    %96 = vmatpush.msra.mxu0 0.0
    %97 = vmatpush.msra.mxu0 %v55
    %98 = vmatpush.msra.mxu0 %v53
    %99 = vmatpush.msra.mxu0 %v51
    %100 = vmatpush.msra.mxu0 %v49
    %101 = vmatpush.msra.mxu0 %v47
    %102 = vmatmul.f32.gmra.mxu0 %v58
    %v103 = vpop.f32.mrf.mxu0
    %v104 = vadd.f32 0.0, %v103
    %105 = vmatmul.f32.gmra.mxu0 %v61
    %v106 = vpop.f32.mrf.mxu0
    %v107 = vadd.f32 0.0, %v106
    %108 = vdwg.mxu0
    %v109 = vmul.f32 %v81, %v84
    %v110 = vmul.f32 %v104, %v107
    %111 = vst [vmem:[#allocation7] sm:$0xff] %v109
    %112 = vst [vmem:[#allocation7 + $0x8] sm:$0xff] %v110
    // Predicated region
    $region18: #{tpu_custom_call.1} parent=1 // pred_check
      _
    $region19: #{tpu_custom_call.1} parent=1 // pred_check_branch
      %114 = sbr.rel (0) target = $region21
    $region20: #{tpu_custom_call.1} parent=1 // pred_region
      %116 = vsyncadd [#allocation4], 0
      %s118 = sshll.u32 [#allocation7], 4
      %s119 = int_to_ptr.vmem [resolvable:$true] %s118
      %s120 = sshll.u32 %s2, 4
      %s121 = int_to_ptr.hbm [resolvable:$true] %s120
      %123 = dma.vmem_to_hbm [thread:$0]  %s119, 256, %s121, [#allocation4]
    $region21: #{tpu_custom_call.1} parent=1 // pred_fallthru
      _
    // Predicated region
    $region22: #{tpu_custom_call.1} parent=1 // pred_check
      _
    $region23: #{tpu_custom_call.1} parent=1 // pred_check_branch
      %125 = sbr.rel (0) target = $region25
    $region24: #{tpu_custom_call.1} parent=1 // pred_region
      %127 = dma.done [#allocation4], 256
    $region25: #{tpu_custom_call.1} parent=1 // pred_fallthru
      _
    %128 = vsyncpa [#allocation3], 1
    %129 = vsyncpa [#allocation6], 1
    %130 = vsyncpa [#allocation4], 1

</llo_original>
